<compile_context>
chip_gen: v7x
topology: tpu7x:2x2x1
jax: 0.10.0
libtpu: 0.0.40
codegen_flags: <defaults>
</compile_context>

<pallas_src>
import jax
import jax.numpy as jnp
from jax.experimental import pallas as pl
from jax.experimental.pallas import tpu as pltpu

IN_DIM = 28 * 28      # 784
H1 = 128
H2 = 64
OUT = 10
PAD = 128             # lane-dense padded feature width
TM_MAX = 512          # M-tile: multiple of 256 (v6e MXU) and of 16 (bf16 sublanes)
                      # fits easily in v5e's 16 MiB scoped VMEM (~3 MB/step total)


# ---------------- fused Pallas kernel ----------------

def _leaky_relu(x):
    return jnp.where(x >= 0.0, x, 0.01 * x)   # PyTorch default negative_slope=0.01


def _mlp_kernel(x_ref, w1_ref, b1_ref, w2_ref, b2_ref, w3_ref, b3_ref, o_ref):
    # Layer 1: Linear(784, 128) + LeakyReLU   (bf16 inputs/weights, f32 acc)
    h = jnp.dot(x_ref[...], w1_ref[...], preferred_element_type=jnp.float32)
    h = _leaky_relu(h + b1_ref[...])
    # FiLMConditioning(cond=None) is identity  (layer_noise=None default path)
    # Layer 2: Linear(128, 64) + LeakyReLU    (N zero-padded 64 -> 128)
    h = jnp.dot(h.astype(jnp.bfloat16), w2_ref[...],
                preferred_element_type=jnp.float32)
    h = _leaky_relu(h + b2_ref[...])
    # FiLMConditioning(cond=None) is identity
    # Layer 3: Linear(64, 10)  (K rows 64..127 zero, N zero-padded 10 -> 128)
    o_ref[...] = (jnp.dot(h.astype(jnp.bfloat16), w3_ref[...],
                          preferred_element_type=jnp.float32) + b3_ref[...])


def _round_up(n, m):
    return ((n + m - 1) // m) * m


def noise_linear_film_forward_padded(x, p):
    """Hot-path entry point.

    x: [B, 784] (any float dtype); p: prepared params (prepare_params).
    Returns [B_pad, 128] float32 padded logits (lanes OUT..127 are exactly 0,
    rows B..B_pad-1 are padding).  Consumers should slice [:B, :OUT] lazily.
    """
    B = x.shape[0]
    tm = min(TM_MAX, _round_up(max(B, 1), 16))
    b_pad = _round_up(B, tm)

    xb = x.astype(jnp.bfloat16)
    if b_pad != B:
        xb = jnp.pad(xb, ((0, b_pad - B), (0, 0)))

    grid = (b_pad // tm,)
    flops = 2 * b_pad * (IN_DIM * H1 + H1 * PAD + PAD * PAD)
    bytes_accessed = (b_pad * IN_DIM * 2                # x read (bf16)
                      + b_pad * PAD * 4                 # padded output write (f32)
                      + (IN_DIM * H1 + H1 * PAD + PAD * PAD) * 2   # bf16 weights
                      + 3 * PAD * 4)                    # f32 biases

    return pl.pallas_call(
        _mlp_kernel,
        out_shape=jax.ShapeDtypeStruct((b_pad, PAD), jnp.float32),
        grid=grid,
        in_specs=[
            pl.BlockSpec((tm, IN_DIM), lambda i: (i, 0)),     # x tile
            pl.BlockSpec((IN_DIM, H1), lambda i: (0, 0)),     # w1 (resident)
            pl.BlockSpec((1, PAD),     lambda i: (0, 0)),     # b1
            pl.BlockSpec((H1, PAD),    lambda i: (0, 0)),     # w2
            pl.BlockSpec((1, PAD),     lambda i: (0, 0)),     # b2
            pl.BlockSpec((PAD, PAD),   lambda i: (0, 0)),     # w3
            pl.BlockSpec((1, PAD),     lambda i: (0, 0)),     # b3
        ],
        out_specs=pl.BlockSpec((tm, PAD), lambda i: (i, 0)),
        compiler_params=pltpu.CompilerParams(
            dimension_semantics=("parallel",)),
        cost_estimate=pl.CostEstimate(flops=flops, transcendentals=0,
                                      bytes_accessed=bytes_accessed),
    )(xb, p['w1'], p['b1'], p['w2'], p['b2'], p['w3'], p['b3'])


def noise_linear_film_forward(x, p):
    """Module-exact output [B, 10] float32 (slices the padded kernel result)."""
    B = x.shape[0]
    out_pad = noise_linear_film_forward_padded(x, p)
    return out_pad[:B, :OUT]


# ---------------- parameters ----------------

def init_params(key):
    """PyTorch-layout params (Linear weight is [out_features, in_features])."""
    ks = jax.random.split(key, 6)
    s = 0.05
    return {
        'w1': s * jax.random.normal(ks[0], (H1, IN_DIM), jnp.float32),
        'b1': s * jax.random.normal(ks[1], (H1,), jnp.float32),
        'w2': s * jax.random.normal(ks[2], (H2, H1), jnp.float32),
        'b2': s * jax.random.normal(ks[3], (H2,), jnp.float32),
        'w3': s * jax.random.normal(ks[4], (OUT, H2), jnp.float32),
        'b3': s * jax.random.normal(ks[5], (OUT,), jnp.float32),
    }


def prepare_params(p):
    """One-time prep: transpose to [in, out], zero-pad feature dims to 128,
    cast weights to bf16 (biases stay f32 for the f32 accumulation path)."""
    w1 = p['w1'].T.astype(jnp.bfloat16)                              # [784, 128]
    b1 = p['b1'][None, :].astype(jnp.float32)                        # [1, 128]
    w2 = (jnp.zeros((H1, PAD), jnp.float32).at[:, :H2].set(p['w2'].T)
          ).astype(jnp.bfloat16)                                     # [128, 128]
    b2 = jnp.zeros((1, PAD), jnp.float32).at[0, :H2].set(p['b2'])
    w3 = (jnp.zeros((PAD, PAD), jnp.float32).at[:H2, :OUT].set(p['w3'].T)
          ).astype(jnp.bfloat16)                                     # [128, 128]
    b3 = jnp.zeros((1, PAD), jnp.float32).at[0, :OUT].set(p['b3'])
    return {'w1': w1, 'b1': b1, 'w2': w2, 'b2': b2, 'w3': w3, 'b3': b3}


def reference_forward(x, p):
    h = _leaky_relu(x @ p['w1'].T + p['b1'])
    h = _leaky_relu(h @ p['w2'].T + p['b2'])
    return h @ p['w3'].T + p['b3']


if __name__ == "__main__":
    key = jax.random.PRNGKey(0)
    pkey, xkey = jax.random.split(key)
    params = init_params(pkey)
    prepped = prepare_params(params)

    x = jax.random.normal(xkey, (2, IN_DIM), jnp.float32)   # batch=2, 28*28 inputs

    # Hot path returns padded logits; slice at the consumer (here, the test).
    out_pad = jax.jit(noise_linear_film_forward_padded)(x, prepped)
    out_pad = jax.block_until_ready(out_pad)
    out = out_pad[:2, :OUT]

    assert out.shape == (2, OUT) and out.dtype == jnp.float32
    # Padded lanes must be exactly zero (w3/b3 padding invariant).
    assert bool(jnp.all(out_pad[:2, OUT:] == 0.0))
    ref = reference_forward(x, params)
    assert bool(jnp.allclose(out, ref, atol=5e-2, rtol=5e-2))
    print("KERNEL_OK")
</pallas_src>

<mosaic_0001>
module attributes {stable_mosaic.version = 11 : i64} {
  func.func @_mlp_kernel(%arg0: i32, %arg1: memref<16x784xbf16, #tpu.memory_space<vmem>>, %arg2: memref<784x128xbf16, #tpu.memory_space<vmem>>, %arg3: memref<1x128xf32, #tpu.memory_space<vmem>>, %arg4: memref<128x128xbf16, #tpu.memory_space<vmem>>, %arg5: memref<1x128xf32, #tpu.memory_space<vmem>>, %arg6: memref<128x128xbf16, #tpu.memory_space<vmem>>, %arg7: memref<1x128xf32, #tpu.memory_space<vmem>>, %arg8: memref<16x128xf32, #tpu.memory_space<vmem>>) attributes {dimension_semantics = [#tpu.dimension_semantics<parallel>], iteration_bounds = array<i64: 1>, scalar_prefetch = 0 : i64, scratch_operands = 0 : i64, tpu.core_type = #tpu.core_type<tc>, window_params = [{transform_indices = @transform_0, window_bounds = array<i64: 16, 784>}, {pipeline_mode = #tpu.pipeline_mode<synchronous>, transform_indices = @transform_1, window_bounds = array<i64: 784, 128>}, {pipeline_mode = #tpu.pipeline_mode<synchronous>, transform_indices = @transform_2, window_bounds = array<i64: 1, 128>}, {pipeline_mode = #tpu.pipeline_mode<synchronous>, transform_indices = @transform_3, window_bounds = array<i64: 128, 128>}, {pipeline_mode = #tpu.pipeline_mode<synchronous>, transform_indices = @transform_4, window_bounds = array<i64: 1, 128>}, {pipeline_mode = #tpu.pipeline_mode<synchronous>, transform_indices = @transform_5, window_bounds = array<i64: 128, 128>}, {pipeline_mode = #tpu.pipeline_mode<synchronous>, transform_indices = @transform_6, window_bounds = array<i64: 1, 128>}, {transform_indices = @transform_7, window_bounds = array<i64: 16, 128>}]} {
    %c0 = arith.constant 0 : index
    %c0_0 = arith.constant 0 : index
    %0 = vector.load %arg1[%c0, %c0_0] : memref<16x784xbf16, #tpu.memory_space<vmem>>, vector<16x784xbf16>
    %c0_1 = arith.constant 0 : index
    %c0_2 = arith.constant 0 : index
    %1 = vector.load %arg2[%c0_1, %c0_2] : memref<784x128xbf16, #tpu.memory_space<vmem>>, vector<784x128xbf16>
    %cst = arith.constant dense<0.000000e+00> : vector<16x128xf32>
    %2 = tpu.matmul %0, %1, %cst {dimension_numbers = #tpu.dot_dimension_numbers<[1], [0], [0], [1], [0, 0, 1, 1], [], []>} : vector<16x784xbf16>, vector<784x128xbf16>, vector<16x128xf32> -> vector<16x128xf32>
    %c0_3 = arith.constant 0 : index
    %c0_4 = arith.constant 0 : index
    %3 = vector.load %arg3[%c0_3, %c0_4] : memref<1x128xf32, #tpu.memory_space<vmem>>, vector<1x128xf32>
    %4 = vector.broadcast %3 : vector<1x128xf32> to vector<16x128xf32>
    %5 = arith.addf %2, %4 : vector<16x128xf32>
    %cst_5 = arith.constant 0.000000e+00 : f32
    %6 = vector.broadcast %cst_5 : f32 to vector<16x128xf32>
    %7 = arith.cmpf oge, %5, %6 : vector<16x128xf32>
    %cst_6 = arith.constant 0.00999999977 : f32
    %8 = vector.broadcast %cst_6 : f32 to vector<16x128xf32>
    %9 = arith.mulf %8, %5 : vector<16x128xf32>
    %10 = arith.select %7, %5, %9 : vector<16x128xi1>, vector<16x128xf32>
    %11 = arith.truncf %10 : vector<16x128xf32> to vector<16x128xbf16>
    %c0_7 = arith.constant 0 : index
    %c0_8 = arith.constant 0 : index
    %12 = vector.load %arg4[%c0_7, %c0_8] : memref<128x128xbf16, #tpu.memory_space<vmem>>, vector<128x128xbf16>
    %cst_9 = arith.constant dense<0.000000e+00> : vector<16x128xf32>
    %13 = tpu.matmul %11, %12, %cst_9 {dimension_numbers = #tpu.dot_dimension_numbers<[1], [0], [0], [1], [0, 0, 1, 1], [], []>} : vector<16x128xbf16>, vector<128x128xbf16>, vector<16x128xf32> -> vector<16x128xf32>
    %c0_10 = arith.constant 0 : index
    %c0_11 = arith.constant 0 : index
    %14 = vector.load %arg5[%c0_10, %c0_11] : memref<1x128xf32, #tpu.memory_space<vmem>>, vector<1x128xf32>
    %15 = vector.broadcast %14 : vector<1x128xf32> to vector<16x128xf32>
    %16 = arith.addf %13, %15 : vector<16x128xf32>
    %cst_12 = arith.constant 0.000000e+00 : f32
    %17 = vector.broadcast %cst_12 : f32 to vector<16x128xf32>
    %18 = arith.cmpf oge, %16, %17 : vector<16x128xf32>
    %cst_13 = arith.constant 0.00999999977 : f32
    %19 = vector.broadcast %cst_13 : f32 to vector<16x128xf32>
    %20 = arith.mulf %19, %16 : vector<16x128xf32>
    %21 = arith.select %18, %16, %20 : vector<16x128xi1>, vector<16x128xf32>
    %22 = arith.truncf %21 : vector<16x128xf32> to vector<16x128xbf16>
    %c0_14 = arith.constant 0 : index
    %c0_15 = arith.constant 0 : index
    %23 = vector.load %arg6[%c0_14, %c0_15] : memref<128x128xbf16, #tpu.memory_space<vmem>>, vector<128x128xbf16>
    %cst_16 = arith.constant dense<0.000000e+00> : vector<16x128xf32>
    %24 = tpu.matmul %22, %23, %cst_16 {dimension_numbers = #tpu.dot_dimension_numbers<[1], [0], [0], [1], [0, 0, 1, 1], [], []>} : vector<16x128xbf16>, vector<128x128xbf16>, vector<16x128xf32> -> vector<16x128xf32>
    %c0_17 = arith.constant 0 : index
    %c0_18 = arith.constant 0 : index
    %25 = vector.load %arg7[%c0_17, %c0_18] : memref<1x128xf32, #tpu.memory_space<vmem>>, vector<1x128xf32>
    %26 = vector.broadcast %25 : vector<1x128xf32> to vector<16x128xf32>
    %27 = arith.addf %24, %26 : vector<16x128xf32>
    %c0_19 = arith.constant 0 : index
    %c0_20 = arith.constant 0 : index
    %28 = vector.load %arg8[%c0_19, %c0_20] : memref<16x128xf32, #tpu.memory_space<vmem>>, vector<16x128xf32>
    tpu.vector_store %arg8[%c0_19, %c0_20], %27 {strides = array<i32>} : memref<16x128xf32, #tpu.memory_space<vmem>>, vector<16x128xf32>,
    return
  }
  func.func @transform_0(%arg0: i32) -> (i32, i32) {
    %c0_i32 = arith.constant 0 : i32
    %c0_i32_0 = arith.constant 0 : i32
    return %arg0, %c0_i32 : i32, i32
  }
  func.func @transform_1(%arg0: i32) -> (i32, i32) {
    %c0_i32 = arith.constant 0 : i32
    %c0_i32_0 = arith.constant 0 : i32
    %c0_i32_1 = arith.constant 0 : i32
    return %c0_i32, %c0_i32_0 : i32, i32
  }
  func.func @transform_2(%arg0: i32) -> (i32, i32) {
    %c0_i32 = arith.constant 0 : i32
    %c0_i32_0 = arith.constant 0 : i32
    %c0_i32_1 = arith.constant 0 : i32
    return %c0_i32, %c0_i32_0 : i32, i32
  }
  func.func @transform_3(%arg0: i32) -> (i32, i32) {
    %c0_i32 = arith.constant 0 : i32
    %c0_i32_0 = arith.constant 0 : i32
    %c0_i32_1 = arith.constant 0 : i32
    return %c0_i32, %c0_i32_0 : i32, i32
  }
  func.func @transform_4(%arg0: i32) -> (i32, i32) {
    %c0_i32 = arith.constant 0 : i32
    %c0_i32_0 = arith.constant 0 : i32
    %c0_i32_1 = arith.constant 0 : i32
    return %c0_i32, %c0_i32_0 : i32, i32
  }
  func.func @transform_5(%arg0: i32) -> (i32, i32) {
    %c0_i32 = arith.constant 0 : i32
    %c0_i32_0 = arith.constant 0 : i32
    %c0_i32_1 = arith.constant 0 : i32
    return %c0_i32, %c0_i32_0 : i32, i32
  }
  func.func @transform_6(%arg0: i32) -> (i32, i32) {
    %c0_i32 = arith.constant 0 : i32
    %c0_i32_0 = arith.constant 0 : i32
    %c0_i32_1 = arith.constant 0 : i32
    return %c0_i32, %c0_i32_0 : i32, i32
  }
  func.func @transform_7(%arg0: i32) -> (i32, i32) {
    %c0_i32 = arith.constant 0 : i32
    %c0_i32_0 = arith.constant 0 : i32
    return %arg0, %c0_i32 : i32, i32
  }
}

</mosaic_0001>

<llo_original>
// kernel: noise_linear_film_forward_padded.1
$region0: #{noise_linear_film_forward_padded.1}
  #allocation0 [shape = 'u32[]', space=smem, size = 0x4, offset = 0x4, fixed_abs, tag = 'smem constant byte address 0x4 - core index']
  #allocation1 [shape = 'u32[144,128]{1,0:T(1,128)}', space=vmem, size = 0x12000, scoped, tag = 'internal scratch']
  %s0 = inlined_call_operand.vmem [shape: bf16[16,784], index: 0, kind: input, shape index: {}]
  %s1 = inlined_call_operand.hbm [shape: bf16[784,128], index: 1, kind: input, shape index: {}]
  %s2 = inlined_call_operand.vmem [shape: f32[1,128], index: 2, kind: input, shape index: {}]
  %s3 = inlined_call_operand.vmem [shape: bf16[128,128], index: 3, kind: input, shape index: {}]
  %s4 = inlined_call_operand.vmem [shape: f32[1,128], index: 4, kind: input, shape index: {}]
  %s5 = inlined_call_operand.hbm [shape: bf16[128,128], index: 5, kind: input, shape index: {}]
  %s6 = inlined_call_operand.vmem [shape: f32[1,128], index: 6, kind: input, shape index: {}]
  %s7 = inlined_call_operand.hbm [shape: f32[16,128], index: 7, kind: output, shape index: {}]
  %s8 = sld [smem:[#allocation0]]
  $region46: #{noise_linear_film_forward_padded.1} parent=0
    _
  %s10 = ssub.s32 1, %s8
  %s11 = scalar_select 0, %s10, %s8
  $region1: #{noise_linear_film_forward_padded.1} parent=0
    #allocation2 [shape = 'u8[200704]{0}', space=vmem, size = 0x31000, scoped, tag = 'input window, operand 1, single buffered']
    #allocation3 [shape = 's32[1]{0}', space=sflag, size = 0x4, scoped, tag = 'scoped memory for noise_linear_film_forward_padded.1']
    #allocation4 [shape = 's32[1]{0}', space=sflag, size = 0x4, scoped, tag = 'scoped memory for noise_linear_film_forward_padded.1']
    #allocation5 [shape = 'u8[32768]{0}', space=vmem, size = 0x8000, scoped, tag = 'input window, operand 5, single buffered']
    #allocation6 [shape = 's32[1]{0}', space=sflag, size = 0x4, scoped, tag = 'scoped memory for noise_linear_film_forward_padded.1']
    #allocation7 [shape = 'u8[8192]{0}', space=vmem, size = 0x2000, scoped, tag = 'output window, operand 0, single buffered']
    %12 = vsyncpa [#allocation3], 0
    %13 = vsyncpa [#allocation6], 0
    %14 = vsyncpa [#allocation4], 0
    // Predicated region
    $region2: #{noise_linear_film_forward_padded.1} parent=1 // pred_check
      _
    $region3: #{noise_linear_film_forward_padded.1} parent=1 // pred_check_branch
      %16 = sbr.rel (0) target = $region5
    $region4: #{noise_linear_film_forward_padded.1} parent=1 // pred_region
      _
    $region5: #{noise_linear_film_forward_padded.1} parent=1 // pred_fallthru
      _
    // Predicated region
    $region6: #{noise_linear_film_forward_padded.1} parent=1 // pred_check
      _
    $region7: #{noise_linear_film_forward_padded.1} parent=1 // pred_check_branch
      %18 = sbr.rel (0) target = $region9
    $region8: #{noise_linear_film_forward_padded.1} parent=1 // pred_region
      %s20 = ssub.s32 6272, 6272
      %21 = vsyncadd [#allocation3], %s20
      %s22 = sshll.u32 [#allocation2], 4
      %s23 = int_to_ptr.vmem [resolvable:$true] %s22
      %28 = dma.hbm_to_vmem [thread:$0]  %s1, 6272, %s23, [#allocation3], 64, 64, 4
    $region9: #{noise_linear_film_forward_padded.1} parent=1 // pred_fallthru
      _
    // Predicated region
    $region10: #{noise_linear_film_forward_padded.1} parent=1 // pred_check
      _
    $region11: #{noise_linear_film_forward_padded.1} parent=1 // pred_check_branch
      %30 = sbr.rel (0) target = $region13
    $region12: #{noise_linear_film_forward_padded.1} parent=1 // pred_region
      _
    $region13: #{noise_linear_film_forward_padded.1} parent=1 // pred_fallthru
      _
    // Predicated region
    $region14: #{noise_linear_film_forward_padded.1} parent=1 // pred_check
      _
    $region15: #{noise_linear_film_forward_padded.1} parent=1 // pred_check_branch
      %32 = sbr.rel (0) target = $region17
    $region16: #{noise_linear_film_forward_padded.1} parent=1 // pred_region
      _
    $region17: #{noise_linear_film_forward_padded.1} parent=1 // pred_fallthru
      _
    // Predicated region
    $region18: #{noise_linear_film_forward_padded.1} parent=1 // pred_check
      _
    $region19: #{noise_linear_film_forward_padded.1} parent=1 // pred_check_branch
      %34 = sbr.rel (0) target = $region21
    $region20: #{noise_linear_film_forward_padded.1} parent=1 // pred_region
      _
    $region21: #{noise_linear_film_forward_padded.1} parent=1 // pred_fallthru
      _
    // Predicated region
    $region22: #{noise_linear_film_forward_padded.1} parent=1 // pred_check
      _
    $region23: #{noise_linear_film_forward_padded.1} parent=1 // pred_check_branch
      %36 = sbr.rel (0) target = $region25
    $region24: #{noise_linear_film_forward_padded.1} parent=1 // pred_region
      %s38 = ssub.s32 1024, 1024
      %39 = vsyncadd [#allocation6], %s38
      %s40 = sshll.u32 [#allocation5], 4
      %s41 = int_to_ptr.vmem [resolvable:$true] %s40
      %46 = dma.hbm_to_vmem [thread:$0]  %s5, 1024, %s41, [#allocation6], 64, 64, 4
    $region25: #{noise_linear_film_forward_padded.1} parent=1 // pred_fallthru
      _
    // Predicated region
    $region26: #{noise_linear_film_forward_padded.1} parent=1 // pred_check
      _
    $region27: #{noise_linear_film_forward_padded.1} parent=1 // pred_check_branch
      %48 = sbr.rel (0) target = $region29
    $region28: #{noise_linear_film_forward_padded.1} parent=1 // pred_region
      _
    $region29: #{noise_linear_film_forward_padded.1} parent=1 // pred_fallthru
      _
    // Predicated region
    $region30: #{noise_linear_film_forward_padded.1} parent=1 // pred_check
      _
    $region31: #{noise_linear_film_forward_padded.1} parent=1 // pred_check_branch
      %50 = sbr.rel (0) target = $region33
    $region32: #{noise_linear_film_forward_padded.1} parent=1 // pred_region
      %51 = dma.done [#allocation3], 6272
    $region33: #{noise_linear_film_forward_padded.1} parent=1 // pred_fallthru
      _
    // Predicated region
    $region34: #{noise_linear_film_forward_padded.1} parent=1 // pred_check
      _
    $region35: #{noise_linear_film_forward_padded.1} parent=1 // pred_check_branch
      %53 = sbr.rel (0) target = $region37
    $region36: #{noise_linear_film_forward_padded.1} parent=1 // pred_region
      %54 = dma.done [#allocation6], 1024
    $region37: #{noise_linear_film_forward_padded.1} parent=1 // pred_fallthru
      _
    %v56 = vld [vmem:[%s0] sm:$0xff]
    %v57 = vld [vmem:[%s0 + $0x8] sm:$0xff]
    %v58 = vld [vmem:[%s0 + $0x10] sm:$0xff]
    %v59 = vld [vmem:[%s0 + $0x18] sm:$0xf]
    %v60 = vld [vmem:[%s0 + $0x1c] sm:$0xff]
    %v61 = vld [vmem:[%s0 + $0x24] sm:$0xff]
    %v62 = vld [vmem:[%s0 + $0x2c] sm:$0xff]
    %v63 = vld [vmem:[%s0 + $0x34] sm:$0xf]
    %v64 = vld [vmem:[#allocation2] sm:$0xf]
    %v65 = vld [vmem:[#allocation2 + $0x4] sm:$0xf]
    %v66 = vld [vmem:[#allocation2 + $0x8] sm:$0xf]
    %v67 = vld [vmem:[#allocation2 + $0xc] sm:$0xf]
    %v68 = vld [vmem:[#allocation2 + $0x10] sm:$0xf]
    %v69 = vld [vmem:[#allocation2 + $0x14] sm:$0xf]
    %v70 = vld [vmem:[#allocation2 + $0x18] sm:$0xf]
    %v71 = vld [vmem:[#allocation2 + $0x1c] sm:$0xf]
    %v72 = vld [vmem:[#allocation2 + $0x20] sm:$0xf]
    %v73 = vld [vmem:[#allocation2 + $0x24] sm:$0xf]
    %v74 = vld [vmem:[#allocation2 + $0x28] sm:$0xf]
    %v75 = vld [vmem:[#allocation2 + $0x2c] sm:$0xf]
    %v76 = vld [vmem:[#allocation2 + $0x30] sm:$0xf]
    %v77 = vld [vmem:[#allocation2 + $0x34] sm:$0xf]
    %v78 = vld [vmem:[#allocation2 + $0x38] sm:$0xf]
    %v79 = vld [vmem:[#allocation2 + $0x3c] sm:$0xf]
    %v80 = vld [vmem:[#allocation2 + $0x40] sm:$0xf]
    %v81 = vld [vmem:[#allocation2 + $0x44] sm:$0xf]
    %v82 = vld [vmem:[#allocation2 + $0x48] sm:$0xf]
    %v83 = vld [vmem:[#allocation2 + $0x4c] sm:$0xf]
    %v84 = vld [vmem:[#allocation2 + $0x50] sm:$0xf]
    %v85 = vld [vmem:[#allocation2 + $0x54] sm:$0xf]
    %v86 = vld [vmem:[#allocation2 + $0x58] sm:$0xf]
    %v87 = vld [vmem:[#allocation2 + $0x5c] sm:$0xf]
    %v88 = vld [vmem:[#allocation2 + $0x60] sm:$0xf]
    %v89 = vld [vmem:[#allocation2 + $0x64] sm:$0xf]
    %v90 = vld [vmem:[#allocation2 + $0x68] sm:$0xf]
    %v91 = vld [vmem:[#allocation2 + $0x6c] sm:$0xf]
    %v92 = vld [vmem:[#allocation2 + $0x70] sm:$0xf]
    %v93 = vld [vmem:[#allocation2 + $0x74] sm:$0xf]
    %v94 = vld [vmem:[#allocation2 + $0x78] sm:$0xf]
    %v95 = vld [vmem:[#allocation2 + $0x7c] sm:$0xf]
    %v96 = vld [vmem:[#allocation2 + $0x80] sm:$0xf]
    %v97 = vld [vmem:[#allocation2 + $0x84] sm:$0xf]
    %v98 = vld [vmem:[#allocation2 + $0x88] sm:$0xf]
    %v99 = vld [vmem:[#allocation2 + $0x8c] sm:$0xf]
    %v100 = vld [vmem:[#allocation2 + $0x90] sm:$0xf]
    %v101 = vld [vmem:[#allocation2 + $0x94] sm:$0xf]
    %v102 = vld [vmem:[#allocation2 + $0x98] sm:$0xf]
    %v103 = vld [vmem:[#allocation2 + $0x9c] sm:$0xf]
    %v104 = vld [vmem:[#allocation2 + $0xa0] sm:$0xf]
    %v105 = vld [vmem:[#allocation2 + $0xa4] sm:$0xf]
    %v106 = vld [vmem:[#allocation2 + $0xa8] sm:$0xf]
    %v107 = vld [vmem:[#allocation2 + $0xac] sm:$0xf]
    %v108 = vld [vmem:[#allocation2 + $0xb0] sm:$0xf]
    %v109 = vld [vmem:[#allocation2 + $0xb4] sm:$0xf]
    %v110 = vld [vmem:[#allocation2 + $0xb8] sm:$0xf]
    %v111 = vld [vmem:[#allocation2 + $0xbc] sm:$0xf]
    %v112 = vld [vmem:[#allocation2 + $0xc0] sm:$0xf]
    %v113 = vld [vmem:[#allocation2 + $0xc4] sm:$0xf]
    %v114 = vld [vmem:[#allocation2 + $0xc8] sm:$0xf]
    %v115 = vld [vmem:[#allocation2 + $0xcc] sm:$0xf]
    %v116 = vld [vmem:[#allocation2 + $0xd0] sm:$0xf]
    %v117 = vld [vmem:[#allocation2 + $0xd4] sm:$0xf]
    %v118 = vld [vmem:[#allocation2 + $0xd8] sm:$0xf]
    %v119 = vld [vmem:[#allocation2 + $0xdc] sm:$0xf]
    %v120 = vld [vmem:[#allocation2 + $0xe0] sm:$0xf]
    %v121 = vld [vmem:[#allocation2 + $0xe4] sm:$0xf]
    %v122 = vld [vmem:[#allocation2 + $0xe8] sm:$0xf]
    %v123 = vld [vmem:[#allocation2 + $0xec] sm:$0xf]
    %v124 = vld [vmem:[#allocation2 + $0xf0] sm:$0xf]
    %v125 = vld [vmem:[#allocation2 + $0xf4] sm:$0xf]
    %v126 = vld [vmem:[#allocation2 + $0xf8] sm:$0xf]
    %v127 = vld [vmem:[#allocation2 + $0xfc] sm:$0xf]
    %v128 = vld [vmem:[#allocation2 + $0x100] sm:$0xf]
    %v129 = vld [vmem:[#allocation2 + $0x104] sm:$0xf]
    %v130 = vld [vmem:[#allocation2 + $0x108] sm:$0xf]
    %v131 = vld [vmem:[#allocation2 + $0x10c] sm:$0xf]
    %v132 = vld [vmem:[#allocation2 + $0x110] sm:$0xf]
    %v133 = vld [vmem:[#allocation2 + $0x114] sm:$0xf]
    %v134 = vld [vmem:[#allocation2 + $0x118] sm:$0xf]
    %v135 = vld [vmem:[#allocation2 + $0x11c] sm:$0xf]
    %v136 = vld [vmem:[#allocation2 + $0x120] sm:$0xf]
    %v137 = vld [vmem:[#allocation2 + $0x124] sm:$0xf]
    %v138 = vld [vmem:[#allocation2 + $0x128] sm:$0xf]
    %v139 = vld [vmem:[#allocation2 + $0x12c] sm:$0xf]
    %v140 = vld [vmem:[#allocation2 + $0x130] sm:$0xf]
    %v141 = vld [vmem:[#allocation2 + $0x134] sm:$0xf]
    %v142 = vld [vmem:[#allocation2 + $0x138] sm:$0xf]
    %v143 = vld [vmem:[#allocation2 + $0x13c] sm:$0xf]
    %v144 = vld [vmem:[#allocation2 + $0x140] sm:$0xf]
    %v145 = vld [vmem:[#allocation2 + $0x144] sm:$0xf]
    %v146 = vld [vmem:[#allocation2 + $0x148] sm:$0xf]
    %v147 = vld [vmem:[#allocation2 + $0x14c] sm:$0xf]
    %v148 = vld [vmem:[#allocation2 + $0x150] sm:$0xf]
    %v149 = vld [vmem:[#allocation2 + $0x154] sm:$0xf]
    %v150 = vld [vmem:[#allocation2 + $0x158] sm:$0xf]
    %v151 = vld [vmem:[#allocation2 + $0x15c] sm:$0xf]
    %v152 = vld [vmem:[#allocation2 + $0x160] sm:$0xf]
    %v153 = vld [vmem:[#allocation2 + $0x164] sm:$0xf]
    %v154 = vld [vmem:[#allocation2 + $0x168] sm:$0xf]
    %v155 = vld [vmem:[#allocation2 + $0x16c] sm:$0xf]
    %v156 = vld [vmem:[#allocation2 + $0x170] sm:$0xf]
    %v157 = vld [vmem:[#allocation2 + $0x174] sm:$0xf]
    %v158 = vld [vmem:[#allocation2 + $0x178] sm:$0xf]
    %v159 = vld [vmem:[#allocation2 + $0x17c] sm:$0xf]
    %v160 = vld [vmem:[#allocation2 + $0x180] sm:$0xf]
    %v161 = vld [vmem:[#allocation2 + $0x184] sm:$0xf]
    %v162 = vld [vmem:[%s2] sm:$0x1]
    %v164 = vlaneseq
    %v165 = vshrl.u32 %v164, 7
    %v166 = vsub.s32 0, %v165
    %v167 = vrot.slane %v162, %v166
    %v177 = vunpack.c.l.b16 %v56
    %v178 = vunpack.c.h.b16 %v56
    %v179 = vunpack.c.l.b16 %v57
    %v180 = vunpack.c.h.b16 %v57
    %v181 = vunpack.c.l.b16 %v58
    %v182 = vunpack.c.h.b16 %v58
    %v183 = vunpack.c.l.b16 %v59
    %v184 = vunpack.c.l.b16 %v60
    %v185 = vunpack.c.h.b16 %v60
    %v186 = vunpack.c.l.b16 %v61
    %v187 = vunpack.c.h.b16 %v61
    %v188 = vunpack.c.l.b16 %v62
    %v189 = vunpack.c.h.b16 %v62
    %v190 = vunpack.c.l.b16 %v63
    %v191 = vpack.c.b16 %v184, %v177
    %v192 = vpack.c.b16 %v185, %v178
    %v193 = vpack.c.b16 %v186, %v179
    %v194 = vpack.c.b16 %v187, %v180
    %v195 = vpack.c.b16 %v188, %v181
    %v196 = vpack.c.b16 %v189, %v182
    %v197 = vpack.c.b16 %v190, %v183
    %v302 = vunpack.c.l.b16 %v64
    %v303 = vunpack.c.l.b16 %v65
    %v304 = vunpack.c.l.b16 %v66
    %v305 = vunpack.c.l.b16 %v67
    %v306 = vunpack.c.l.b16 %v68
    %v307 = vunpack.c.l.b16 %v69
    %v308 = vunpack.c.l.b16 %v70
    %v309 = vunpack.c.l.b16 %v71
    %v310 = vunpack.c.l.b16 %v72
    %v311 = vunpack.c.l.b16 %v73
    %v312 = vunpack.c.l.b16 %v74
    %v313 = vunpack.c.l.b16 %v75
    %v314 = vunpack.c.l.b16 %v76
    %v315 = vunpack.c.l.b16 %v77
    %v316 = vunpack.c.l.b16 %v78
    %v317 = vunpack.c.l.b16 %v79
    %v318 = vunpack.c.l.b16 %v80
    %v319 = vunpack.c.l.b16 %v81
    %v320 = vunpack.c.l.b16 %v82
    %v321 = vunpack.c.l.b16 %v83
    %v322 = vunpack.c.l.b16 %v84
    %v323 = vunpack.c.l.b16 %v85
    %v324 = vunpack.c.l.b16 %v86
    %v325 = vunpack.c.l.b16 %v87
    %v326 = vunpack.c.l.b16 %v88
    %v327 = vunpack.c.l.b16 %v89
    %v328 = vunpack.c.l.b16 %v90
    %v329 = vunpack.c.l.b16 %v91
    %v330 = vunpack.c.l.b16 %v92
    %v331 = vunpack.c.l.b16 %v93
    %v332 = vunpack.c.l.b16 %v94
    %v333 = vunpack.c.l.b16 %v95
    %v334 = vunpack.c.l.b16 %v96
    %v335 = vunpack.c.l.b16 %v97
    %v336 = vunpack.c.l.b16 %v98
    %v337 = vunpack.c.l.b16 %v99
    %v338 = vunpack.c.l.b16 %v100
    %v339 = vunpack.c.l.b16 %v101
    %v340 = vunpack.c.l.b16 %v102
    %v341 = vunpack.c.l.b16 %v103
    %v342 = vunpack.c.l.b16 %v104
    %v343 = vunpack.c.l.b16 %v105
    %v344 = vunpack.c.l.b16 %v106
    %v345 = vunpack.c.l.b16 %v107
    %v346 = vunpack.c.l.b16 %v108
    %v347 = vunpack.c.l.b16 %v109
    %v348 = vunpack.c.l.b16 %v110
    %v349 = vunpack.c.l.b16 %v111
    %v350 = vunpack.c.l.b16 %v112
    %v351 = vunpack.c.l.b16 %v113
    %v352 = vunpack.c.l.b16 %v114
    %v353 = vunpack.c.l.b16 %v115
    %v354 = vunpack.c.l.b16 %v116
    %v355 = vunpack.c.l.b16 %v117
    %v356 = vunpack.c.l.b16 %v118
    %v357 = vunpack.c.l.b16 %v119
    %v358 = vunpack.c.l.b16 %v120
    %v359 = vunpack.c.l.b16 %v121
    %v360 = vunpack.c.l.b16 %v122
    %v361 = vunpack.c.l.b16 %v123
    %v362 = vunpack.c.l.b16 %v124
    %v363 = vunpack.c.l.b16 %v125
    %v364 = vunpack.c.l.b16 %v126
    %v365 = vunpack.c.l.b16 %v127
    %v366 = vunpack.c.l.b16 %v128
    %v367 = vunpack.c.l.b16 %v129
    %v368 = vunpack.c.l.b16 %v130
    %v369 = vunpack.c.l.b16 %v131
    %v370 = vunpack.c.l.b16 %v132
    %v371 = vunpack.c.l.b16 %v133
    %v372 = vunpack.c.l.b16 %v134
    %v373 = vunpack.c.l.b16 %v135
    %v374 = vunpack.c.l.b16 %v136
    %v375 = vunpack.c.l.b16 %v137
    %v376 = vunpack.c.l.b16 %v138
    %v377 = vunpack.c.l.b16 %v139
    %v378 = vunpack.c.l.b16 %v140
    %v379 = vunpack.c.l.b16 %v141
    %v380 = vunpack.c.l.b16 %v142
    %v381 = vunpack.c.l.b16 %v143
    %v382 = vunpack.c.l.b16 %v144
    %v383 = vunpack.c.l.b16 %v145
    %v384 = vunpack.c.l.b16 %v146
    %v385 = vunpack.c.l.b16 %v147
    %v386 = vunpack.c.l.b16 %v148
    %v387 = vunpack.c.l.b16 %v149
    %v388 = vunpack.c.l.b16 %v150
    %v389 = vunpack.c.l.b16 %v151
    %v390 = vunpack.c.l.b16 %v152
    %v391 = vunpack.c.l.b16 %v153
    %v392 = vunpack.c.l.b16 %v154
    %v393 = vunpack.c.l.b16 %v155
    %v394 = vunpack.c.l.b16 %v156
    %v395 = vunpack.c.l.b16 %v157
    %v396 = vunpack.c.l.b16 %v158
    %v397 = vunpack.c.l.b16 %v159
    %v398 = vunpack.c.l.b16 %v160
    %v399 = vunpack.c.l.b16 %v161
    %v400 = vpack.c.b16 %v303, %v302
    %v401 = vpack.c.b16 %v305, %v304
    %v402 = vpack.c.b16 %v307, %v306
    %v403 = vpack.c.b16 %v309, %v308
    %v404 = vpack.c.b16 %v311, %v310
    %v405 = vpack.c.b16 %v313, %v312
    %v406 = vpack.c.b16 %v315, %v314
    %v407 = vpack.c.b16 %v317, %v316
    %v408 = vpack.c.b16 %v319, %v318
    %v409 = vpack.c.b16 %v321, %v320
    %v410 = vpack.c.b16 %v323, %v322
    %v411 = vpack.c.b16 %v325, %v324
    %v412 = vpack.c.b16 %v327, %v326
    %v413 = vpack.c.b16 %v329, %v328
    %v414 = vpack.c.b16 %v331, %v330
    %v415 = vpack.c.b16 %v333, %v332
    %v416 = vpack.c.b16 %v335, %v334
    %v417 = vpack.c.b16 %v337, %v336
    %v418 = vpack.c.b16 %v339, %v338
    %v419 = vpack.c.b16 %v341, %v340
    %v420 = vpack.c.b16 %v343, %v342
    %v421 = vpack.c.b16 %v345, %v344
    %v422 = vpack.c.b16 %v347, %v346
    %v423 = vpack.c.b16 %v349, %v348
    %v424 = vpack.c.b16 %v351, %v350
    %v425 = vpack.c.b16 %v353, %v352
    %v426 = vpack.c.b16 %v355, %v354
    %v427 = vpack.c.b16 %v357, %v356
    %v428 = vpack.c.b16 %v359, %v358
    %v429 = vpack.c.b16 %v361, %v360
    %v430 = vpack.c.b16 %v363, %v362
    %v431 = vpack.c.b16 %v365, %v364
    %v432 = vpack.c.b16 %v367, %v366
    %v433 = vpack.c.b16 %v369, %v368
    %v434 = vpack.c.b16 %v371, %v370
    %v435 = vpack.c.b16 %v373, %v372
    %v436 = vpack.c.b16 %v375, %v374
    %v437 = vpack.c.b16 %v377, %v376
    %v438 = vpack.c.b16 %v379, %v378
    %v439 = vpack.c.b16 %v381, %v380
    %v440 = vpack.c.b16 %v383, %v382
    %v441 = vpack.c.b16 %v385, %v384
    %v442 = vpack.c.b16 %v387, %v386
    %v443 = vpack.c.b16 %v389, %v388
    %v444 = vpack.c.b16 %v391, %v390
    %v445 = vpack.c.b16 %v393, %v392
    %v446 = vpack.c.b16 %v395, %v394
    %v447 = vpack.c.b16 %v397, %v396
    %v448 = vpack.c.b16 %v399, %v398
    %vm498 = vcmask 130048
    %v500 = vsel %vm498, %v197, 0
    %502 = vmatprep.subr.bf16.mxu0 0
    %503 = vmatpush1.bf16.msra.mxu0 %v400
    %504 = vmatprep.subr.bf16.mxu0 0
    %505 = vmatpush1.bf16.msra.mxu0 %v401
    %506 = vmatprep.subr.bf16.mxu0 0
    %507 = vmatpush1.bf16.msra.mxu0 %v402
    %508 = vmatprep.subr.bf16.mxu0 0
    %509 = vmatpush1.bf16.msra.mxu0 %v403
    %510 = vmatprep.subr.bf16.mxu0 0
    %511 = vmatpush1.bf16.msra.mxu0 %v404
    %512 = vmatprep.subr.bf16.mxu0 0
    %513 = vmatpush1.bf16.msra.mxu0 %v405
    %514 = vmatprep.subr.bf16.mxu0 0
    %515 = vmatpush1.bf16.msra.mxu0 %v406
    %516 = vmatprep.subr.bf16.mxu0 0
    %517 = vmatpush1.bf16.msra.mxu0 %v407
    %518 = vmatprep.subr.bf16.mxu0 0
    %519 = vmatpush1.bf16.msra.mxu0 %v408
    %520 = vmatprep.subr.bf16.mxu0 0
    %521 = vmatpush1.bf16.msra.mxu0 %v409
    %522 = vmatprep.subr.bf16.mxu0 0
    %523 = vmatpush1.bf16.msra.mxu0 %v410
    %524 = vmatprep.subr.bf16.mxu0 0
    %525 = vmatpush1.bf16.msra.mxu0 %v411
    %526 = vmatprep.subr.bf16.mxu0 0
    %527 = vmatpush1.bf16.msra.mxu0 %v412
    %528 = vmatprep.subr.bf16.mxu0 0
    %529 = vmatpush1.bf16.msra.mxu0 %v413
    %530 = vmatprep.subr.bf16.mxu0 0
    %531 = vmatpush1.bf16.msra.mxu0 %v414
    %532 = vmatprep.subr.bf16.mxu0 0
    %533 = vmatpush1.bf16.msra.mxu0 %v415
    %534 = vmatprep.mubr.bf16.mxu0 %v192
    %535 = vmatmul.mubr.bf16.gmra.mrb[0].mxu0 %v191
    %v536 = vpop.f32.mrb[0].mxu0
    %v537 = vadd.f32 %v167, %v536
    %v538 = vpop.f32.mrb[0].mxu0
    %v539 = vpop.f32.mrb[0].mxu0
    %v540 = vadd.f32 %v167, %v539
    %v541 = vpop.f32.mrb[0].mxu0
    %542 = vdwg.mxu0
    %543 = vmatprep.subr.bf16.mxu0 0
    %544 = vmatpush1.bf16.msra.mxu0 %v416
    %545 = vmatprep.subr.bf16.mxu0 0
    %546 = vmatpush1.bf16.msra.mxu0 %v417
    %547 = vmatprep.subr.bf16.mxu0 0
    %548 = vmatpush1.bf16.msra.mxu0 %v418
    %549 = vmatprep.subr.bf16.mxu0 0
    %550 = vmatpush1.bf16.msra.mxu0 %v419
    %551 = vmatprep.subr.bf16.mxu0 0
    %552 = vmatpush1.bf16.msra.mxu0 %v420
    %553 = vmatprep.subr.bf16.mxu0 0
    %554 = vmatpush1.bf16.msra.mxu0 %v421
    %555 = vmatprep.subr.bf16.mxu0 0
    %556 = vmatpush1.bf16.msra.mxu0 %v422
    %557 = vmatprep.subr.bf16.mxu0 0
    %558 = vmatpush1.bf16.msra.mxu0 %v423
    %559 = vmatprep.subr.bf16.mxu0 0
    %560 = vmatpush1.bf16.msra.mxu0 %v424
    %561 = vmatprep.subr.bf16.mxu0 0
    %562 = vmatpush1.bf16.msra.mxu0 %v425
    %563 = vmatprep.subr.bf16.mxu0 0
    %564 = vmatpush1.bf16.msra.mxu0 %v426
    %565 = vmatprep.subr.bf16.mxu0 0
    %566 = vmatpush1.bf16.msra.mxu0 %v427
    %567 = vmatprep.subr.bf16.mxu0 0
    %568 = vmatpush1.bf16.msra.mxu0 %v428
    %569 = vmatprep.subr.bf16.mxu0 0
    %570 = vmatpush1.bf16.msra.mxu0 %v429
    %571 = vmatprep.subr.bf16.mxu0 0
    %572 = vmatpush1.bf16.msra.mxu0 %v430
    %573 = vmatprep.subr.bf16.mxu0 0
    %574 = vmatpush1.bf16.msra.mxu0 %v431
    %575 = vmatprep.mubr.bf16.mxu0 %v194
    %576 = vmatmul.mubr.bf16.gmra.mrb[0].mxu0 %v193
    %v577 = vpop.f32.mrb[0].mxu0
    %v578 = vadd.f32 %v537, %v577
    %v579 = vpop.f32.mrb[0].mxu0
    %v580 = vpop.f32.mrb[0].mxu0
    %v581 = vadd.f32 %v540, %v580
    %v582 = vpop.f32.mrb[0].mxu0
    %583 = vdwg.mxu0
    %584 = vmatprep.subr.bf16.mxu0 0
    %585 = vmatpush1.bf16.msra.mxu0 %v432
    %586 = vmatprep.subr.bf16.mxu0 0
    %587 = vmatpush1.bf16.msra.mxu0 %v433
    %588 = vmatprep.subr.bf16.mxu0 0
    %589 = vmatpush1.bf16.msra.mxu0 %v434
    %590 = vmatprep.subr.bf16.mxu0 0
    %591 = vmatpush1.bf16.msra.mxu0 %v435
    %592 = vmatprep.subr.bf16.mxu0 0
    %593 = vmatpush1.bf16.msra.mxu0 %v436
    %594 = vmatprep.subr.bf16.mxu0 0
    %595 = vmatpush1.bf16.msra.mxu0 %v437
    %596 = vmatprep.subr.bf16.mxu0 0
    %597 = vmatpush1.bf16.msra.mxu0 %v438
    %598 = vmatprep.subr.bf16.mxu0 0
    %599 = vmatpush1.bf16.msra.mxu0 %v439
    %600 = vmatprep.subr.bf16.mxu0 0
    %601 = vmatpush1.bf16.msra.mxu0 %v440
    %602 = vmatprep.subr.bf16.mxu0 0
    %603 = vmatpush1.bf16.msra.mxu0 %v441
    %604 = vmatprep.subr.bf16.mxu0 0
    %605 = vmatpush1.bf16.msra.mxu0 %v442
    %606 = vmatprep.subr.bf16.mxu0 0
    %607 = vmatpush1.bf16.msra.mxu0 %v443
    %608 = vmatprep.subr.bf16.mxu0 0
    %609 = vmatpush1.bf16.msra.mxu0 %v444
    %610 = vmatprep.subr.bf16.mxu0 0
    %611 = vmatpush1.bf16.msra.mxu0 %v445
    %612 = vmatprep.subr.bf16.mxu0 0
    %613 = vmatpush1.bf16.msra.mxu0 %v446
    %614 = vmatprep.subr.bf16.mxu0 0
    %615 = vmatpush1.bf16.msra.mxu0 %v447
    %616 = vmatprep.mubr.bf16.mxu0 %v196
    %617 = vmatmul.mubr.bf16.gmra.mrb[0].mxu0 %v195
    %v618 = vpop.f32.mrb[0].mxu0
    %v619 = vadd.f32 %v578, %v618
    %v620 = vpop.f32.mrb[0].mxu0
    %v621 = vpop.f32.mrb[0].mxu0
    %v622 = vadd.f32 %v581, %v621
    %v623 = vpop.f32.mrb[0].mxu0
    %624 = vdwg.mxu0
    %625 = vmatprep.subr.bf16.mxu0 0
    %626 = vmatpush1.bf16.msra.mxu0 %v448
    %627 = vmatprep.subr.bf16.mxu0 0
    %628 = vmatpush1.bf16.msra.mxu0 0
    %629 = vmatprep.subr.bf16.mxu0 0
    %630 = vmatpush1.bf16.msra.mxu0 0
    %631 = vmatprep.subr.bf16.mxu0 0
    %632 = vmatpush1.bf16.msra.mxu0 0
    %633 = vmatprep.subr.bf16.mxu0 0
    %634 = vmatpush1.bf16.msra.mxu0 0
    %635 = vmatprep.subr.bf16.mxu0 0
    %636 = vmatpush1.bf16.msra.mxu0 0
    %637 = vmatprep.subr.bf16.mxu0 0
    %638 = vmatpush1.bf16.msra.mxu0 0
    %639 = vmatprep.subr.bf16.mxu0 0
    %640 = vmatpush1.bf16.msra.mxu0 0
    %641 = vmatprep.subr.bf16.mxu0 0
    %642 = vmatpush1.bf16.msra.mxu0 0
    %643 = vmatprep.subr.bf16.mxu0 0
    %644 = vmatpush1.bf16.msra.mxu0 0
    %645 = vmatprep.subr.bf16.mxu0 0
    %646 = vmatpush1.bf16.msra.mxu0 0
    %647 = vmatprep.subr.bf16.mxu0 0
    %648 = vmatpush1.bf16.msra.mxu0 0
    %649 = vmatprep.subr.bf16.mxu0 0
    %650 = vmatpush1.bf16.msra.mxu0 0
    %651 = vmatprep.subr.bf16.mxu0 0
    %652 = vmatpush1.bf16.msra.mxu0 0
    %653 = vmatprep.subr.bf16.mxu0 0
    %654 = vmatpush1.bf16.msra.mxu0 0
    %655 = vmatprep.subr.bf16.mxu0 0
    %656 = vmatpush1.bf16.msra.mxu0 0
    %657 = vmatprep.mubr.bf16.mxu0 0
    %658 = vmatmul.mubr.bf16.gmra.mrb[0].mxu0 %v500
    %v659 = vpop.f32.mrb[0].mxu0
    %v660 = vadd.f32 %v619, %v659
    %v661 = vpop.f32.mrb[0].mxu0
    %v662 = vpop.f32.mrb[0].mxu0
    %v663 = vadd.f32 %v622, %v662
    %v664 = vpop.f32.mrb[0].mxu0
    %665 = vdwg.mxu0
    %vm666 = vcmp.ge.f32.partialorder %v660, 0.0
    %vm667 = vcmp.ge.f32.partialorder %v663, 0.0
    %v668 = vmul.f32 %v660, 0.01
    %v669 = vmul.f32 %v663, 0.01
    %v670 = vsel %vm666, %v660, %v668
    %v671 = vsel %vm667, %v663, %v669
    %v672 = vpack.c.bf16 %v671, %v670
    %v673 = vld [vmem:[%s3] sm:$0xf]
    %v674 = vld [vmem:[%s3 + $0x4] sm:$0xf]
    %v675 = vld [vmem:[%s3 + $0x8] sm:$0xf]
    %v676 = vld [vmem:[%s3 + $0xc] sm:$0xf]
    %v677 = vld [vmem:[%s3 + $0x10] sm:$0xf]
    %v678 = vld [vmem:[%s3 + $0x14] sm:$0xf]
    %v679 = vld [vmem:[%s3 + $0x18] sm:$0xf]
    %v680 = vld [vmem:[%s3 + $0x1c] sm:$0xf]
    %v681 = vld [vmem:[%s3 + $0x20] sm:$0xf]
    %v682 = vld [vmem:[%s3 + $0x24] sm:$0xf]
    %v683 = vld [vmem:[%s3 + $0x28] sm:$0xf]
    %v684 = vld [vmem:[%s3 + $0x2c] sm:$0xf]
    %v685 = vld [vmem:[%s3 + $0x30] sm:$0xf]
    %v686 = vld [vmem:[%s3 + $0x34] sm:$0xf]
    %v687 = vld [vmem:[%s3 + $0x38] sm:$0xf]
    %v688 = vld [vmem:[%s3 + $0x3c] sm:$0xf]
    %v689 = vld [vmem:[%s4] sm:$0x1]
    %v691 = vlaneseq
    %v692 = vshrl.u32 %v691, 7
    %v693 = vsub.s32 0, %v692
    %v694 = vrot.slane %v689, %v693
    %v712 = vunpack.c.l.b16 %v673
    %v713 = vunpack.c.l.b16 %v674
    %v714 = vunpack.c.l.b16 %v675
    %v715 = vunpack.c.l.b16 %v676
    %v716 = vunpack.c.l.b16 %v677
    %v717 = vunpack.c.l.b16 %v678
    %v718 = vunpack.c.l.b16 %v679
    %v719 = vunpack.c.l.b16 %v680
    %v720 = vunpack.c.l.b16 %v681
    %v721 = vunpack.c.l.b16 %v682
    %v722 = vunpack.c.l.b16 %v683
    %v723 = vunpack.c.l.b16 %v684
    %v724 = vunpack.c.l.b16 %v685
    %v725 = vunpack.c.l.b16 %v686
    %v726 = vunpack.c.l.b16 %v687
    %v727 = vunpack.c.l.b16 %v688
    %v728 = vpack.c.b16 %v713, %v712
    %v729 = vpack.c.b16 %v715, %v714
    %v730 = vpack.c.b16 %v717, %v716
    %v731 = vpack.c.b16 %v719, %v718
    %v732 = vpack.c.b16 %v721, %v720
    %v733 = vpack.c.b16 %v723, %v722
    %v734 = vpack.c.b16 %v725, %v724
    %v735 = vpack.c.b16 %v727, %v726
    %744 = vmatprep.subr.bf16.mxu0 0
    %745 = vmatpush1.bf16.msra.mxu0 %v728
    %746 = vmatprep.subr.bf16.mxu0 0
    %747 = vmatpush1.bf16.msra.mxu0 %v729
    %748 = vmatprep.subr.bf16.mxu0 0
    %749 = vmatpush1.bf16.msra.mxu0 %v730
    %750 = vmatprep.subr.bf16.mxu0 0
    %751 = vmatpush1.bf16.msra.mxu0 %v731
    %752 = vmatprep.subr.bf16.mxu0 0
    %753 = vmatpush1.bf16.msra.mxu0 %v732
    %754 = vmatprep.subr.bf16.mxu0 0
    %755 = vmatpush1.bf16.msra.mxu0 %v733
    %756 = vmatprep.subr.bf16.mxu0 0
    %757 = vmatpush1.bf16.msra.mxu0 %v734
    %758 = vmatprep.subr.bf16.mxu0 0
    %759 = vmatpush1.bf16.msra.mxu0 %v735
    %760 = vmatprep.subr.bf16.mxu0 0
    %761 = vmatpush1.bf16.msra.mxu0 0
    %762 = vmatprep.subr.bf16.mxu0 0
    %763 = vmatpush1.bf16.msra.mxu0 0
    %764 = vmatprep.subr.bf16.mxu0 0
    %765 = vmatpush1.bf16.msra.mxu0 0
    %766 = vmatprep.subr.bf16.mxu0 0
    %767 = vmatpush1.bf16.msra.mxu0 0
    %768 = vmatprep.subr.bf16.mxu0 0
    %769 = vmatpush1.bf16.msra.mxu0 0
    %770 = vmatprep.subr.bf16.mxu0 0
    %771 = vmatpush1.bf16.msra.mxu0 0
    %772 = vmatprep.subr.bf16.mxu0 0
    %773 = vmatpush1.bf16.msra.mxu0 0
    %774 = vmatprep.subr.bf16.mxu0 0
    %775 = vmatpush1.bf16.msra.mxu0 0
    %776 = vmatprep.mubr.bf16.mxu0 0
    %777 = vmatmul.mubr.bf16.gmra.mrb[0].mxu0 %v672
    %v778 = vpop.f32.mrb[0].mxu0
    %v779 = vadd.f32 %v694, %v778
    %v780 = vpop.f32.mrb[0].mxu0
    %v781 = vpop.f32.mrb[0].mxu0
    %v782 = vadd.f32 %v694, %v781
    %v783 = vpop.f32.mrb[0].mxu0
    %784 = vdwg.mxu0
    %vm785 = vcmp.ge.f32.partialorder %v779, 0.0
    %vm786 = vcmp.ge.f32.partialorder %v782, 0.0
    %v787 = vmul.f32 %v779, 0.01
    %v788 = vmul.f32 %v782, 0.01
    %v789 = vsel %vm785, %v779, %v787
    %v790 = vsel %vm786, %v782, %v788
    %v791 = vpack.c.bf16 %v790, %v789
    %v792 = vld [vmem:[#allocation5] sm:$0xf]
    %v793 = vld [vmem:[#allocation5 + $0x4] sm:$0xf]
    %v794 = vld [vmem:[#allocation5 + $0x8] sm:$0xf]
    %v795 = vld [vmem:[#allocation5 + $0xc] sm:$0xf]
    %v796 = vld [vmem:[#allocation5 + $0x10] sm:$0xf]
    %v797 = vld [vmem:[#allocation5 + $0x14] sm:$0xf]
    %v798 = vld [vmem:[#allocation5 + $0x18] sm:$0xf]
    %v799 = vld [vmem:[#allocation5 + $0x1c] sm:$0xf]
    %v800 = vld [vmem:[#allocation5 + $0x20] sm:$0xf]
    %v801 = vld [vmem:[#allocation5 + $0x24] sm:$0xf]
    %v802 = vld [vmem:[#allocation5 + $0x28] sm:$0xf]
    %v803 = vld [vmem:[#allocation5 + $0x2c] sm:$0xf]
    %v804 = vld [vmem:[#allocation5 + $0x30] sm:$0xf]
    %v805 = vld [vmem:[#allocation5 + $0x34] sm:$0xf]
    %v806 = vld [vmem:[#allocation5 + $0x38] sm:$0xf]
    %v807 = vld [vmem:[#allocation5 + $0x3c] sm:$0xf]
    %v808 = vld [vmem:[%s6] sm:$0x1]
    %v810 = vlaneseq
    %v811 = vshrl.u32 %v810, 7
    %v812 = vsub.s32 0, %v811
    %v813 = vrot.slane %v808, %v812
    %v831 = vunpack.c.l.b16 %v792
    %v832 = vunpack.c.l.b16 %v793
    %v833 = vunpack.c.l.b16 %v794
    %v834 = vunpack.c.l.b16 %v795
    %v835 = vunpack.c.l.b16 %v796
    %v836 = vunpack.c.l.b16 %v797
    %v837 = vunpack.c.l.b16 %v798
    %v838 = vunpack.c.l.b16 %v799
    %v839 = vunpack.c.l.b16 %v800
    %v840 = vunpack.c.l.b16 %v801
    %v841 = vunpack.c.l.b16 %v802
    %v842 = vunpack.c.l.b16 %v803
    %v843 = vunpack.c.l.b16 %v804
    %v844 = vunpack.c.l.b16 %v805
    %v845 = vunpack.c.l.b16 %v806
    %v846 = vunpack.c.l.b16 %v807
    %v847 = vpack.c.b16 %v832, %v831
    %v848 = vpack.c.b16 %v834, %v833
    %v849 = vpack.c.b16 %v836, %v835
    %v850 = vpack.c.b16 %v838, %v837
    %v851 = vpack.c.b16 %v840, %v839
    %v852 = vpack.c.b16 %v842, %v841
    %v853 = vpack.c.b16 %v844, %v843
    %v854 = vpack.c.b16 %v846, %v845
    %863 = vmatprep.subr.bf16.mxu0 0
    %864 = vmatpush1.bf16.msra.mxu0 %v847
    %865 = vmatprep.subr.bf16.mxu0 0
    %866 = vmatpush1.bf16.msra.mxu0 %v848
    %867 = vmatprep.subr.bf16.mxu0 0
    %868 = vmatpush1.bf16.msra.mxu0 %v849
    %869 = vmatprep.subr.bf16.mxu0 0
    %870 = vmatpush1.bf16.msra.mxu0 %v850
    %871 = vmatprep.subr.bf16.mxu0 0
    %872 = vmatpush1.bf16.msra.mxu0 %v851
    %873 = vmatprep.subr.bf16.mxu0 0
    %874 = vmatpush1.bf16.msra.mxu0 %v852
    %875 = vmatprep.subr.bf16.mxu0 0
    %876 = vmatpush1.bf16.msra.mxu0 %v853
    %877 = vmatprep.subr.bf16.mxu0 0
    %878 = vmatpush1.bf16.msra.mxu0 %v854
    %879 = vmatprep.subr.bf16.mxu0 0
    %880 = vmatpush1.bf16.msra.mxu0 0
    %881 = vmatprep.subr.bf16.mxu0 0
    %882 = vmatpush1.bf16.msra.mxu0 0
    %883 = vmatprep.subr.bf16.mxu0 0
    %884 = vmatpush1.bf16.msra.mxu0 0
    %885 = vmatprep.subr.bf16.mxu0 0
    %886 = vmatpush1.bf16.msra.mxu0 0
    %887 = vmatprep.subr.bf16.mxu0 0
    %888 = vmatpush1.bf16.msra.mxu0 0
    %889 = vmatprep.subr.bf16.mxu0 0
    %890 = vmatpush1.bf16.msra.mxu0 0
    %891 = vmatprep.subr.bf16.mxu0 0
    %892 = vmatpush1.bf16.msra.mxu0 0
    %893 = vmatprep.subr.bf16.mxu0 0
    %894 = vmatpush1.bf16.msra.mxu0 0
    %895 = vmatprep.mubr.bf16.mxu0 0
    %896 = vmatmul.mubr.bf16.gmra.mrb[0].mxu0 %v791
    %v897 = vpop.f32.mrb[0].mxu0
    %v898 = vadd.f32 %v813, %v897
    %v899 = vpop.f32.mrb[0].mxu0
    %v900 = vpop.f32.mrb[0].mxu0
    %v901 = vadd.f32 %v813, %v900
    %v902 = vpop.f32.mrb[0].mxu0
    %903 = vdwg.mxu0
    %904 = vst [vmem:[#allocation7] sm:$0xff] %v898
    %905 = vst [vmem:[#allocation7 + $0x8] sm:$0xff] %v901
    // Predicated region
    $region38: #{noise_linear_film_forward_padded.1} parent=1 // pred_check
      _
    $region39: #{noise_linear_film_forward_padded.1} parent=1 // pred_check_branch
      %907 = sbr.rel (0) target = $region41
    $region40: #{noise_linear_film_forward_padded.1} parent=1 // pred_region
      %s909 = ssub.s32 256, 256
      %910 = vsyncadd [#allocation4], %s909
      %s911 = sshll.u32 [#allocation7], 4
      %s912 = int_to_ptr.vmem [resolvable:$true] %s911
      %917 = dma.vmem_to_hbm [thread:$0]  %s912, 256, %s7, [#allocation4], 128, 128, 8
    $region41: #{noise_linear_film_forward_padded.1} parent=1 // pred_fallthru
      _
    // Predicated region
    $region42: #{noise_linear_film_forward_padded.1} parent=1 // pred_check
      _
    $region43: #{noise_linear_film_forward_padded.1} parent=1 // pred_check_branch
      %919 = sbr.rel (0) target = $region45
    $region44: #{noise_linear_film_forward_padded.1} parent=1 // pred_region
      %920 = dma.done [#allocation4], 256
    $region45: #{noise_linear_film_forward_padded.1} parent=1 // pred_fallthru
      _
    %921 = vsyncpa [#allocation3], 1
    %922 = vsyncpa [#allocation6], 1
    %923 = vsyncpa [#allocation4], 1

</llo_original>
